<compile_context>
chip_gen: v7x
topology: tpu7x:2x2x1
jax: 0.10.0
libtpu: 0.0.40
codegen_flags: <defaults>
</compile_context>

<pallas_src>
import jax
import jax.numpy as jnp
from jax.experimental import pallas as pl
from jax.experimental.pallas import tpu as pltpu

_LANE = 128


def _round_up(x, m):
    return (x + m - 1) // m * m


def _slew_rate_cost_kernel(tau_ref, slew_ref, r_ref, s_ref, cquad_ref, clin_ref,
                           out_ref):
    tau = tau_ref[...].astype(jnp.float32)                                  # (Bt, n_sc)

    # tau_j replicated over the flattened (i, j) lane axis via the MXU:
    # (tau @ R)[b, i*n_sc + j] = tau[b, j]            R = [I I ... I]
    tau_j = jnp.dot(tau, r_ref[...], preferred_element_type=jnp.float32)    # (Bt, n_sc^2)

    # per-batch weighted slab; a bf16 slew feed upcasts inside this fused multiply
    part = slew_ref[...] * tau_j                                            # (Bt, n_sc^2) f32

    # segmented reduce over j via the MXU:
    # v[b, i] = sum_j slewC[b, i, j] * tau[b, j]      S = repeat(I, n_sc, axis=0)
    v = jnp.dot(part, s_ref[...], preferred_element_type=jnp.float32)       # (Bt, n_sc)

    # wrapped quadratic cost, zero-embedded into the full tau space:
    # w[b, j] = sum_i tau[b, i] * C_emb[i, j]
    w = jnp.dot(tau, cquad_ref[...], preferred_element_type=jnp.float32)    # (Bt, n_sc)

    # fused reductions: 0.5*(slew + quad) + linear — one lane reduce per block
    tot = jnp.sum((0.5 * (v + w) + clin_ref[...]) * tau, axis=1, keepdims=True)
    out_ref[...] = tot.astype(out_ref.dtype)                                # (Bt, 1)


def slew_rate_cost(tau, slew_C, C_true, c_true, n_state, n_ctrl,
                   *, vmem_budget_bytes=28 * 1024 * 1024):
    """tau: (B, 2*n_ctrl + n_state); slew_C: (T, B, n_sc, n_sc). Returns (B,)."""
    B, n_sc = tau.shape
    assert n_sc == 2 * n_ctrl + n_state
    n_true = n_state + n_ctrl
    assert C_true.shape == (n_true, n_true) and c_true.shape == (n_true,)
    T = slew_C.shape[0]
    assert slew_C.shape == (T, B, n_sc, n_sc)
    nn = n_sc * n_sc

    # ---- native-layout feed of the dominant tensor: contiguous trailing-dim merge
    # only — no transpose, no pad, no cast pass over HBM.
    slew_flat = slew_C.reshape(T, B, nn)
    slew_elt = jnp.dtype(slew_C.dtype).itemsize
    tau_elt = jnp.dtype(tau.dtype).itemsize

    # ---- tiny resident constants (read once, stay in VMEM across the grid) ------
    eye = jnp.eye(n_sc, dtype=jnp.float32)
    r_mat = jnp.tile(eye, (1, n_sc))                  # (n_sc, n_sc^2): [I I ... I]
    s_mat = jnp.repeat(eye, n_sc, axis=0)             # (n_sc^2, n_sc)
    c_quad = jnp.zeros((n_sc, n_sc), jnp.float32).at[n_ctrl:, n_ctrl:].set(
        C_true.astype(jnp.float32))
    c_lin = jnp.zeros((1, n_sc), jnp.float32).at[0, n_ctrl:].set(
        c_true.astype(jnp.float32))

    # ---- batch-tile policy -------------------------------------------------------
    lanes_slew = _round_up(nn, _LANE)
    lanes_vec = _round_up(n_sc, _LANE)
    # resident constants, conservatively counted with double buffers
    fixed_bytes = 2 * 4 * (_round_up(n_sc, 8) * lanes_slew        # R
                           + _round_up(nn, 8) * lanes_vec         # S
                           + _round_up(n_sc, 8) * lanes_vec       # C_emb
                           + 8 * lanes_vec)                       # c_emb
    bytes_per_row = (2 * lanes_slew * slew_elt                    # slew block, double-buffered
                     + 3 * lanes_slew * 4                         # f32 intermediates (tau_j, part, slack)
                     + 2 * lanes_vec * tau_elt + lanes_vec * 4    # tau block (2x) + f32 copy
                     + 2 * _LANE * 4)                             # (b_tile, 1) out block (lane-padded, 2x)
    avail = max(vmem_budget_bytes - fixed_bytes, 8 * bytes_per_row)
    b_cap = max(8, (avail // bytes_per_row) // 8 * 8)             # VMEM guard

    slew_row_hbm = nn * slew_elt
    floor_rows = _round_up(max(256, (512 * 1024) // max(slew_row_hbm, 1)), 8)  # ~>=0.5 MiB blocks
    target_rows = _round_up(max(8, -(-B // 8)), 8)                # aim for ~8 grid steps on large B
    b_tile = min(b_cap, max(floor_rows, target_rows), _round_up(B, 8))
    if B <= b_tile:
        b_tile = B                                                # exact single (full-dim) block
    num_blocks = pl.cdiv(B, b_tile)

    out = pl.pallas_call(
        _slew_rate_cost_kernel,
        out_shape=jax.ShapeDtypeStruct((B, 1), jnp.float32),
        grid_spec=pltpu.PrefetchScalarGridSpec(
            num_scalar_prefetch=0,
            grid=(num_blocks,),
            in_specs=[
                pl.BlockSpec((b_tile, n_sc), lambda i: (i, 0)),
                pl.BlockSpec((None, b_tile, nn), lambda i: (0, i, 0)),  # native slew_C[0]
                pl.BlockSpec((n_sc, nn), lambda i: (0, 0)),     # R   (resident)
                pl.BlockSpec((nn, n_sc), lambda i: (0, 0)),     # S   (resident)
                pl.BlockSpec((n_sc, n_sc), lambda i: (0, 0)),   # C_emb (resident)
                pl.BlockSpec((1, n_sc), lambda i: (0, 0)),      # c_emb (resident)
            ],
            out_specs=pl.BlockSpec((b_tile, 1), lambda i: (i, 0)),
        ),
        compiler_params=pltpu.CompilerParams(
            dimension_semantics=("parallel",),       # independent B tiles (megacore on v7x)
            vmem_limit_bytes=48 * 1024 * 1024,       # safe on v5e/v6e (128 MiB) and v7x (64 MiB)
        ),
        cost_estimate=pl.CostEstimate(
            flops=int(6 * B * nn + 6 * B * n_sc),
            transcendentals=0,
            bytes_accessed=int(B * nn * slew_elt + B * n_sc * tau_elt + B * 4),
        ),
    )(tau, slew_flat, r_mat, s_mat, c_quad, c_lin)
    return out[:, 0]


def _reference(tau, slew_C, C_true, c_true, n_ctrl):
    true_tau = tau[:, n_ctrl:]
    true_cost = (0.5 * jnp.einsum('bi,ij,bj->b', true_tau, C_true, true_tau)
                 + true_tau @ c_true)
    slew_cost = 0.5 * jnp.einsum('bi,bij,bj->b', tau, slew_C[0], tau)
    return true_cost + slew_cost


if __name__ == "__main__":
    n_state, n_ctrl = 4, 2
    n_sc = 2 * n_ctrl + n_state          # augmented tau dim: [u_prev, x, u]
    n_true = n_state + n_ctrl
    B, T = 4, 3

    key = jax.random.PRNGKey(0)
    k1, k2, k3, k4 = jax.random.split(key, 4)

    tau = jax.random.normal(k1, (B, n_sc), dtype=jnp.float32)

    # Deterministic "parameters": slew penalty matrices and wrapped quadratic cost.
    slew_raw = jax.random.normal(k2, (T, B, n_sc, n_sc), dtype=jnp.float32)
    slew_C = 0.5 * (slew_raw + jnp.swapaxes(slew_raw, -1, -2))   # symmetric
    Ctrue_raw = jax.random.normal(k3, (n_true, n_true), dtype=jnp.float32)
    C_true = Ctrue_raw @ Ctrue_raw.T + n_true * jnp.eye(n_true)  # SPD
    c_true = jax.random.normal(k4, (n_true,), dtype=jnp.float32)

    out = slew_rate_cost(tau, slew_C, C_true, c_true, n_state, n_ctrl)
    out = jax.block_until_ready(out)

    ref = _reference(tau, slew_C, C_true, c_true, n_ctrl)
    assert out.shape == (B,)
    assert jnp.allclose(out, ref, atol=1e-4, rtol=1e-4), (out, ref)

    print("KERNEL_OK")
</pallas_src>

<mosaic_0001>
module attributes {stable_mosaic.version = 11 : i64} {
  func.func @_slew_rate_cost_kernel(%arg0: i32, %arg1: memref<4x8xf32, #tpu.memory_space<vmem>>, %arg2: memref<1x4x64xf32, #tpu.memory_space<vmem>>, %arg3: memref<8x64xf32, #tpu.memory_space<vmem>>, %arg4: memref<64x8xf32, #tpu.memory_space<vmem>>, %arg5: memref<8x8xf32, #tpu.memory_space<vmem>>, %arg6: memref<1x8xf32, #tpu.memory_space<vmem>>, %arg7: memref<4x1xf32, #tpu.memory_space<vmem>>) attributes {dimension_semantics = [#tpu.dimension_semantics<parallel>], iteration_bounds = array<i64: 1>, scalar_prefetch = 0 : i64, scratch_operands = 0 : i64, tpu.core_type = #tpu.core_type<tc>, window_params = [{transform_indices = @transform_0, window_bounds = array<i64: 4, 8>}, {transform_indices = @transform_1, window_bounds = array<i64: 1, 4, 64>}, {pipeline_mode = #tpu.pipeline_mode<synchronous>, transform_indices = @transform_2, window_bounds = array<i64: 8, 64>}, {pipeline_mode = #tpu.pipeline_mode<synchronous>, transform_indices = @transform_3, window_bounds = array<i64: 64, 8>}, {pipeline_mode = #tpu.pipeline_mode<synchronous>, transform_indices = @transform_4, window_bounds = array<i64: 8, 8>}, {pipeline_mode = #tpu.pipeline_mode<synchronous>, transform_indices = @transform_5, window_bounds = array<i64: 1, 8>}, {transform_indices = @transform_6, window_bounds = array<i64: 4, 1>}]} {
    %c0 = arith.constant 0 : index
    %c0_0 = arith.constant 0 : index
    %0 = vector.load %arg1[%c0, %c0_0] : memref<4x8xf32, #tpu.memory_space<vmem>>, vector<4x8xf32>
    %c0_1 = arith.constant 0 : index
    %c0_2 = arith.constant 0 : index
    %1 = vector.load %arg3[%c0_1, %c0_2] : memref<8x64xf32, #tpu.memory_space<vmem>>, vector<8x64xf32>
    %cst = arith.constant dense<0.000000e+00> : vector<4x64xf32>
    %2 = tpu.matmul %0, %1, %cst {dimension_numbers = #tpu.dot_dimension_numbers<[1], [0], [0], [1], [0, 0, 1, 1], [], []>} : vector<4x8xf32>, vector<8x64xf32>, vector<4x64xf32> -> vector<4x64xf32>
    %c0_3 = arith.constant 0 : index
    %c0_4 = arith.constant 0 : index
    %c0_5 = arith.constant 0 : index
    %3 = vector.load %arg2[%c0_3, %c0_4, %c0_5] : memref<1x4x64xf32, #tpu.memory_space<vmem>>, vector<1x4x64xf32>
    %4 = vector.shape_cast %3 : vector<1x4x64xf32> to vector<4x64xf32>
    %5 = arith.mulf %4, %2 : vector<4x64xf32>
    %c0_6 = arith.constant 0 : index
    %c0_7 = arith.constant 0 : index
    %6 = vector.load %arg4[%c0_6, %c0_7] : memref<64x8xf32, #tpu.memory_space<vmem>>, vector<64x8xf32>
    %cst_8 = arith.constant dense<0.000000e+00> : vector<4x8xf32>
    %7 = tpu.matmul %5, %6, %cst_8 {dimension_numbers = #tpu.dot_dimension_numbers<[1], [0], [0], [1], [0, 0, 1, 1], [], []>} : vector<4x64xf32>, vector<64x8xf32>, vector<4x8xf32> -> vector<4x8xf32>
    %c0_9 = arith.constant 0 : index
    %c0_10 = arith.constant 0 : index
    %8 = vector.load %arg5[%c0_9, %c0_10] : memref<8x8xf32, #tpu.memory_space<vmem>>, vector<8x8xf32>
    %cst_11 = arith.constant dense<0.000000e+00> : vector<4x8xf32>
    %9 = tpu.matmul %0, %8, %cst_11 {dimension_numbers = #tpu.dot_dimension_numbers<[1], [0], [0], [1], [0, 0, 1, 1], [], []>} : vector<4x8xf32>, vector<8x8xf32>, vector<4x8xf32> -> vector<4x8xf32>
    %10 = arith.addf %7, %9 : vector<4x8xf32>
    %cst_12 = arith.constant 5.000000e-01 : f32
    %11 = vector.broadcast %cst_12 : f32 to vector<4x8xf32>
    %12 = arith.mulf %11, %10 : vector<4x8xf32>
    %c0_13 = arith.constant 0 : index
    %c0_14 = arith.constant 0 : index
    %13 = vector.load %arg6[%c0_13, %c0_14] : memref<1x8xf32, #tpu.memory_space<vmem>>, vector<1x8xf32>
    %14 = vector.broadcast %13 : vector<1x8xf32> to vector<4x8xf32>
    %15 = arith.addf %12, %14 : vector<4x8xf32>
    %16 = arith.mulf %15, %0 : vector<4x8xf32>
    %cst_15 = arith.constant dense<0.000000e+00> : vector<4xf32>
    %17 = vector.multi_reduction <add>, %16, %cst_15 [1] : vector<4x8xf32> to vector<4xf32>
    %18 = vector.shape_cast %17 : vector<4xf32> to vector<4x1xf32>
    %c0_16 = arith.constant 0 : index
    %c0_17 = arith.constant 0 : index
    %19 = vector.load %arg7[%c0_16, %c0_17] : memref<4x1xf32, #tpu.memory_space<vmem>>, vector<4x1xf32>
    tpu.vector_store %arg7[%c0_16, %c0_17], %18 {strides = array<i32>} : memref<4x1xf32, #tpu.memory_space<vmem>>, vector<4x1xf32>,
    return
  }
  func.func @transform_0(%arg0: i32) -> (i32, i32) {
    %c0_i32 = arith.constant 0 : i32
    %c0_i32_0 = arith.constant 0 : i32
    return %arg0, %c0_i32 : i32, i32
  }
  func.func @transform_1(%arg0: i32) -> (i32, i32, i32) {
    %c0_i32 = arith.constant 0 : i32
    %c0_i32_0 = arith.constant 0 : i32
    %c0_i32_1 = arith.constant 0 : i32
    return %c0_i32, %arg0, %c0_i32_0 : i32, i32, i32
  }
  func.func @transform_2(%arg0: i32) -> (i32, i32) {
    %c0_i32 = arith.constant 0 : i32
    %c0_i32_0 = arith.constant 0 : i32
    %c0_i32_1 = arith.constant 0 : i32
    return %c0_i32, %c0_i32_0 : i32, i32
  }
  func.func @transform_3(%arg0: i32) -> (i32, i32) {
    %c0_i32 = arith.constant 0 : i32
    %c0_i32_0 = arith.constant 0 : i32
    %c0_i32_1 = arith.constant 0 : i32
    return %c0_i32, %c0_i32_0 : i32, i32
  }
  func.func @transform_4(%arg0: i32) -> (i32, i32) {
    %c0_i32 = arith.constant 0 : i32
    %c0_i32_0 = arith.constant 0 : i32
    %c0_i32_1 = arith.constant 0 : i32
    return %c0_i32, %c0_i32_0 : i32, i32
  }
  func.func @transform_5(%arg0: i32) -> (i32, i32) {
    %c0_i32 = arith.constant 0 : i32
    %c0_i32_0 = arith.constant 0 : i32
    %c0_i32_1 = arith.constant 0 : i32
    return %c0_i32, %c0_i32_0 : i32, i32
  }
  func.func @transform_6(%arg0: i32) -> (i32, i32) {
    %c0_i32 = arith.constant 0 : i32
    %c0_i32_0 = arith.constant 0 : i32
    return %arg0, %c0_i32 : i32, i32
  }
}

</mosaic_0001>

<llo_original>
// kernel: tpu_custom_call.1
$region0: #{tpu_custom_call.1}
  #allocation0 [shape = 'u32[]', space=smem, size = 0x4, offset = 0x4, fixed_abs, tag = 'smem constant byte address 0x4 - core index']
  #allocation1 [shape = 'u32[144,128]{1,0:T(1,128)}', space=vmem, size = 0x12000, scoped, tag = 'internal scratch']
  %s0 = inlined_call_operand.vmem [shape: f32[4,8], index: 0, kind: input, shape index: {}]
  %s1 = inlined_call_operand.vmem [shape: f32[3,4,64], index: 1, kind: input, shape index: {}]
  %s2 = inlined_call_operand.vmem [shape: f32[8,64], index: 2, kind: input, shape index: {}]
  %s3 = inlined_call_operand.vmem [shape: f32[64,8], index: 3, kind: input, shape index: {}]
  %s4 = inlined_call_operand.vmem [shape: f32[8,8], index: 4, kind: input, shape index: {}]
  %s5 = inlined_call_operand.vmem [shape: f32[1,8], index: 5, kind: input, shape index: {}]
  %s6 = inlined_call_operand.vmem [shape: f32[4,1], index: 6, kind: output, shape index: {}]
  %s7 = sld [smem:[#allocation0]]
  $region34: #{tpu_custom_call.1} parent=0
    _
  %s9 = ssub.s32 1, %s7
  %s10 = scalar_select 0, %s9, %s7
  // Predicated region
  $region2: #{tpu_custom_call.1} parent=0 // pred_check
    _
  $region3: #{tpu_custom_call.1} parent=0 // pred_check_branch
    %12 = sbr.rel (0) target = $region5
  $region4: #{tpu_custom_call.1} parent=0 // pred_region
    _
  $region5: #{tpu_custom_call.1} parent=0 // pred_fallthru
    _
  // Predicated region
  $region6: #{tpu_custom_call.1} parent=0 // pred_check
    _
  $region7: #{tpu_custom_call.1} parent=0 // pred_check_branch
    %14 = sbr.rel (0) target = $region9
  $region8: #{tpu_custom_call.1} parent=0 // pred_region
    _
  $region9: #{tpu_custom_call.1} parent=0 // pred_fallthru
    _
  // Predicated region
  $region10: #{tpu_custom_call.1} parent=0 // pred_check
    _
  $region11: #{tpu_custom_call.1} parent=0 // pred_check_branch
    %16 = sbr.rel (0) target = $region13
  $region12: #{tpu_custom_call.1} parent=0 // pred_region
    _
  $region13: #{tpu_custom_call.1} parent=0 // pred_fallthru
    _
  // Predicated region
  $region14: #{tpu_custom_call.1} parent=0 // pred_check
    _
  $region15: #{tpu_custom_call.1} parent=0 // pred_check_branch
    %18 = sbr.rel (0) target = $region17
  $region16: #{tpu_custom_call.1} parent=0 // pred_region
    _
  $region17: #{tpu_custom_call.1} parent=0 // pred_fallthru
    _
  // Predicated region
  $region18: #{tpu_custom_call.1} parent=0 // pred_check
    _
  $region19: #{tpu_custom_call.1} parent=0 // pred_check_branch
    %20 = sbr.rel (0) target = $region21
  $region20: #{tpu_custom_call.1} parent=0 // pred_region
    _
  $region21: #{tpu_custom_call.1} parent=0 // pred_fallthru
    _
  // Predicated region
  $region22: #{tpu_custom_call.1} parent=0 // pred_check
    _
  $region23: #{tpu_custom_call.1} parent=0 // pred_check_branch
    %22 = sbr.rel (0) target = $region25
  $region24: #{tpu_custom_call.1} parent=0 // pred_region
    _
  $region25: #{tpu_custom_call.1} parent=0 // pred_fallthru
    _
  %v23 = vld [vmem:[%s0] sm:$0xf]
  %v24 = vld [vmem:[%s2] sm:$0xff]
  %vm25 = vcmask 64512
  %v27 = vsel %vm25, %v23, 0
  %29 = vmatprep.subr.mxu0 0.0
  %30 = vmatpush1.msra.mxu0 %v24
  %31 = vmatprep.subr.mxu0 0.0
  %32 = vmatpush1.msra.mxu0 0.0
  %33 = vmatprep.subr.mxu0 0.0
  %34 = vmatpush1.msra.mxu0 0.0
  %35 = vmatprep.subr.mxu0 0.0
  %36 = vmatpush1.msra.mxu0 0.0
  %37 = vmatprep.subr.mxu0 0.0
  %38 = vmatpush1.msra.mxu0 0.0
  %39 = vmatprep.subr.mxu0 0.0
  %40 = vmatpush1.msra.mxu0 0.0
  %41 = vmatprep.subr.mxu0 0.0
  %42 = vmatpush1.msra.mxu0 0.0
  %43 = vmatprep.subr.mxu0 0.0
  %44 = vmatpush1.msra.mxu0 0.0
  %45 = vmatprep.subr.mxu0 0.0
  %46 = vmatpush1.msra.mxu0 0.0
  %47 = vmatprep.subr.mxu0 0.0
  %48 = vmatpush1.msra.mxu0 0.0
  %49 = vmatprep.subr.mxu0 0.0
  %50 = vmatpush1.msra.mxu0 0.0
  %51 = vmatprep.subr.mxu0 0.0
  %52 = vmatpush1.msra.mxu0 0.0
  %53 = vmatprep.subr.mxu0 0.0
  %54 = vmatpush1.msra.mxu0 0.0
  %55 = vmatprep.subr.mxu0 0.0
  %56 = vmatpush1.msra.mxu0 0.0
  %57 = vmatprep.subr.mxu0 0.0
  %58 = vmatpush1.msra.mxu0 0.0
  %59 = vmatprep.subr.mxu0 0.0
  %60 = vmatpush1.msra.mxu0 0.0
  %61 = vmatprep.subr.mxu0 0.0
  %62 = vmatpush1.msra.mxu0 0.0
  %63 = vmatprep.subr.mxu0 0.0
  %64 = vmatpush1.msra.mxu0 0.0
  %65 = vmatprep.subr.mxu0 0.0
  %66 = vmatpush1.msra.mxu0 0.0
  %67 = vmatprep.subr.mxu0 0.0
  %68 = vmatpush1.msra.mxu0 0.0
  %69 = vmatprep.subr.mxu0 0.0
  %70 = vmatpush1.msra.mxu0 0.0
  %71 = vmatprep.subr.mxu0 0.0
  %72 = vmatpush1.msra.mxu0 0.0
  %73 = vmatprep.subr.mxu0 0.0
  %74 = vmatpush1.msra.mxu0 0.0
  %75 = vmatprep.subr.mxu0 0.0
  %76 = vmatpush1.msra.mxu0 0.0
  %77 = vmatprep.subr.mxu0 0.0
  %78 = vmatpush1.msra.mxu0 0.0
  %79 = vmatprep.subr.mxu0 0.0
  %80 = vmatpush1.msra.mxu0 0.0
  %81 = vmatprep.subr.mxu0 0.0
  %82 = vmatpush1.msra.mxu0 0.0
  %83 = vmatprep.subr.mxu0 0.0
  %84 = vmatpush1.msra.mxu0 0.0
  %85 = vmatprep.subr.mxu0 0.0
  %86 = vmatpush1.msra.mxu0 0.0
  %87 = vmatprep.subr.mxu0 0.0
  %88 = vmatpush1.msra.mxu0 0.0
  %89 = vmatprep.subr.mxu0 0.0
  %90 = vmatpush1.msra.mxu0 0.0
  %91 = vmatprep.subr.mxu0 0.0
  %92 = vmatpush1.msra.mxu0 0.0
  %93 = vmatprep.mubr.f32.mxu0 0.0
  %94 = vmatmul.mubr.f32.gmra.mrb[0].mxu0 %v27
  %v95 = vpop.f32.mrb[0].mxu0
  %v96 = vadd.f32 0.0, %v95
  %v97 = vpop.f32.mrb[0].mxu0
  %98 = vdwg.mxu0
  %v99 = vld [vmem:[%s1] sm:$0xf]
  %v100 = vmul.f32 %v99, %v96
  %v101 = vld [vmem:[%s3] sm:$0xff]
  %v102 = vld [vmem:[%s3 + $0x8] sm:$0xff]
  %v103 = vld [vmem:[%s3 + $0x10] sm:$0xff]
  %v104 = vld [vmem:[%s3 + $0x18] sm:$0xff]
  %v105 = vld [vmem:[%s3 + $0x20] sm:$0xff]
  %v106 = vld [vmem:[%s3 + $0x28] sm:$0xff]
  %v107 = vld [vmem:[%s3 + $0x30] sm:$0xff]
  %v108 = vld [vmem:[%s3 + $0x38] sm:$0xff]
  %v109 = vld [vmem:[%s4] sm:$0xff]
  %110 = vmatprep.subr.mxu0 0.0
  %111 = vmatpush1.msra.mxu0 %v109
  %112 = vmatprep.subr.mxu0 0.0
  %113 = vmatpush1.msra.mxu0 0.0
  %114 = vmatprep.subr.mxu0 0.0
  %115 = vmatpush1.msra.mxu0 0.0
  %116 = vmatprep.subr.mxu0 0.0
  %117 = vmatpush1.msra.mxu0 0.0
  %118 = vmatprep.subr.mxu0 0.0
  %119 = vmatpush1.msra.mxu0 0.0
  %120 = vmatprep.subr.mxu0 0.0
  %121 = vmatpush1.msra.mxu0 0.0
  %122 = vmatprep.subr.mxu0 0.0
  %123 = vmatpush1.msra.mxu0 0.0
  %124 = vmatprep.subr.mxu0 0.0
  %125 = vmatpush1.msra.mxu0 0.0
  %126 = vmatprep.subr.mxu0 0.0
  %127 = vmatpush1.msra.mxu0 0.0
  %128 = vmatprep.subr.mxu0 0.0
  %129 = vmatpush1.msra.mxu0 0.0
  %130 = vmatprep.subr.mxu0 0.0
  %131 = vmatpush1.msra.mxu0 0.0
  %132 = vmatprep.subr.mxu0 0.0
  %133 = vmatpush1.msra.mxu0 0.0
  %134 = vmatprep.subr.mxu0 0.0
  %135 = vmatpush1.msra.mxu0 0.0
  %136 = vmatprep.subr.mxu0 0.0
  %137 = vmatpush1.msra.mxu0 0.0
  %138 = vmatprep.subr.mxu0 0.0
  %139 = vmatpush1.msra.mxu0 0.0
  %140 = vmatprep.subr.mxu0 0.0
  %141 = vmatpush1.msra.mxu0 0.0
  %142 = vmatprep.subr.mxu0 0.0
  %143 = vmatpush1.msra.mxu0 0.0
  %144 = vmatprep.subr.mxu0 0.0
  %145 = vmatpush1.msra.mxu0 0.0
  %146 = vmatprep.subr.mxu0 0.0
  %147 = vmatpush1.msra.mxu0 0.0
  %148 = vmatprep.subr.mxu0 0.0
  %149 = vmatpush1.msra.mxu0 0.0
  %150 = vmatprep.subr.mxu0 0.0
  %151 = vmatpush1.msra.mxu0 0.0
  %152 = vmatprep.subr.mxu0 0.0
  %153 = vmatpush1.msra.mxu0 0.0
  %154 = vmatprep.subr.mxu0 0.0
  %155 = vmatpush1.msra.mxu0 0.0
  %156 = vmatprep.subr.mxu0 0.0
  %157 = vmatpush1.msra.mxu0 0.0
  %158 = vmatprep.subr.mxu0 0.0
  %159 = vmatpush1.msra.mxu0 0.0
  %160 = vmatprep.subr.mxu0 0.0
  %161 = vmatpush1.msra.mxu0 0.0
  %162 = vmatprep.subr.mxu0 0.0
  %163 = vmatpush1.msra.mxu0 0.0
  %164 = vmatprep.subr.mxu0 0.0
  %165 = vmatpush1.msra.mxu0 0.0
  %166 = vmatprep.subr.mxu0 0.0
  %167 = vmatpush1.msra.mxu0 0.0
  %168 = vmatprep.subr.mxu0 0.0
  %169 = vmatpush1.msra.mxu0 0.0
  %170 = vmatprep.subr.mxu0 0.0
  %171 = vmatpush1.msra.mxu0 0.0
  %172 = vmatprep.subr.mxu0 0.0
  %173 = vmatpush1.msra.mxu0 0.0
  %174 = vmatprep.mubr.f32.mxu0 0.0
  %175 = vmatmul.mubr.f32.gmra.mrb[0].mxu0 %v27
  %v176 = vpop.f32.mrb[0].mxu0
  %v177 = vadd.f32 0.0, %v176
  %v178 = vpop.f32.mrb[0].mxu0
  %179 = vdwg.mxu0
  %vm180 = vcmask 523264
  %v182 = vsel %vm180, %v100, 0
  %184 = vmatprep.subr.mxu0 0.0
  %185 = vmatpush1.msra.mxu0 %v101
  %186 = vmatprep.subr.mxu0 0.0
  %187 = vmatpush1.msra.mxu0 %v102
  %188 = vmatprep.subr.mxu0 0.0
  %189 = vmatpush1.msra.mxu0 %v103
  %190 = vmatprep.subr.mxu0 0.0
  %191 = vmatpush1.msra.mxu0 %v104
  %192 = vmatprep.subr.mxu0 0.0
  %193 = vmatpush1.msra.mxu0 %v105
  %194 = vmatprep.subr.mxu0 0.0
  %195 = vmatpush1.msra.mxu0 %v106
  %196 = vmatprep.subr.mxu0 0.0
  %197 = vmatpush1.msra.mxu0 %v107
  %198 = vmatprep.subr.mxu0 0.0
  %199 = vmatpush1.msra.mxu0 %v108
  %200 = vmatprep.subr.mxu0 0.0
  %201 = vmatpush1.msra.mxu0 0.0
  %202 = vmatprep.subr.mxu0 0.0
  %203 = vmatpush1.msra.mxu0 0.0
  %204 = vmatprep.subr.mxu0 0.0
  %205 = vmatpush1.msra.mxu0 0.0
  %206 = vmatprep.subr.mxu0 0.0
  %207 = vmatpush1.msra.mxu0 0.0
  %208 = vmatprep.subr.mxu0 0.0
  %209 = vmatpush1.msra.mxu0 0.0
  %210 = vmatprep.subr.mxu0 0.0
  %211 = vmatpush1.msra.mxu0 0.0
  %212 = vmatprep.subr.mxu0 0.0
  %213 = vmatpush1.msra.mxu0 0.0
  %214 = vmatprep.subr.mxu0 0.0
  %215 = vmatpush1.msra.mxu0 0.0
  %216 = vmatprep.subr.mxu0 0.0
  %217 = vmatpush1.msra.mxu0 0.0
  %218 = vmatprep.subr.mxu0 0.0
  %219 = vmatpush1.msra.mxu0 0.0
  %220 = vmatprep.subr.mxu0 0.0
  %221 = vmatpush1.msra.mxu0 0.0
  %222 = vmatprep.subr.mxu0 0.0
  %223 = vmatpush1.msra.mxu0 0.0
  %224 = vmatprep.subr.mxu0 0.0
  %225 = vmatpush1.msra.mxu0 0.0
  %226 = vmatprep.subr.mxu0 0.0
  %227 = vmatpush1.msra.mxu0 0.0
  %228 = vmatprep.subr.mxu0 0.0
  %229 = vmatpush1.msra.mxu0 0.0
  %230 = vmatprep.subr.mxu0 0.0
  %231 = vmatpush1.msra.mxu0 0.0
  %232 = vmatprep.subr.mxu0 0.0
  %233 = vmatpush1.msra.mxu0 0.0
  %234 = vmatprep.subr.mxu0 0.0
  %235 = vmatpush1.msra.mxu0 0.0
  %236 = vmatprep.subr.mxu0 0.0
  %237 = vmatpush1.msra.mxu0 0.0
  %238 = vmatprep.subr.mxu0 0.0
  %239 = vmatpush1.msra.mxu0 0.0
  %240 = vmatprep.subr.mxu0 0.0
  %241 = vmatpush1.msra.mxu0 0.0
  %242 = vmatprep.subr.mxu0 0.0
  %243 = vmatpush1.msra.mxu0 0.0
  %244 = vmatprep.subr.mxu0 0.0
  %245 = vmatpush1.msra.mxu0 0.0
  %246 = vmatprep.subr.mxu0 0.0
  %247 = vmatpush1.msra.mxu0 0.0
  %248 = vmatprep.mubr.f32.mxu0 0.0
  %249 = vmatmul.mubr.f32.gmra.mrb[0].mxu0 %v182
  %v250 = vpop.f32.mrb[0].mxu0
  %v251 = vadd.f32 %v177, %v250
  %v252 = vpop.f32.mrb[0].mxu0
  %253 = vdwg.mxu0
  %v254 = vmul.f32 %v251, 0.5
  %v255 = vld [vmem:[%s5] sm:$0x1]
  %v257 = vlaneseq
  %v258 = vshrl.u32 %v257, 7
  %v259 = vsub.s32 0, %v258
  %v260 = vrot.slane %v255, %v259
  %v262 = vadd.f32 %v254, %v260
  %v263 = vmul.f32 %v262, %v23
  %vm264 = vcmask 60416
  %v265 = vsel %vm264, %v263, 0.0
  %266 = vadd.xlane.f32.xlu0 %v265
  %v267 = vpop.xlane.xlu0 %266
  %vm268 = vcmask 3072
  %269 = vst.msk [vmem:[%s6] sm:$0xf] %vm268, %v267
  // Predicated region
  $region26: #{tpu_custom_call.1} parent=0 // pred_check
    _
  $region27: #{tpu_custom_call.1} parent=0 // pred_check_branch
    %271 = sbr.rel (0) target = $region29
  $region28: #{tpu_custom_call.1} parent=0 // pred_region
    _
  $region29: #{tpu_custom_call.1} parent=0 // pred_fallthru
    _
  // Predicated region
  $region30: #{tpu_custom_call.1} parent=0 // pred_check
    _
  $region31: #{tpu_custom_call.1} parent=0 // pred_check_branch
    %273 = sbr.rel (0) target = $region33
  $region32: #{tpu_custom_call.1} parent=0 // pred_region
    _
  $region33: #{tpu_custom_call.1} parent=0 // pred_fallthru
    _

</llo_original>
